<compile_context>
chip_gen: v6e
topology: v6e:2x2x1
jax: 0.10.0
libtpu: 0.0.40
codegen_flags: <defaults>
</compile_context>

<pallas_src>
import functools

import jax
import jax.numpy as jnp
from jax.experimental import pallas as pl
from jax.experimental.pallas import tpu as pltpu


def _round_up(x, m):
    return (x + m - 1) // m * m


# ----------------------------------------------------------------------------
# Pallas kernel: implicit-GEMM conv + fused per-tile BN partial statistics
# ----------------------------------------------------------------------------
def _make_conv_stats_kernel(kh, stride, dilation, th, n_t):
    def kernel(x_ref, b_ref, y_ref, stat_ref):
        # x_ref:    (1, Hp_pad, Wp*Cin)    bf16  padded image rows (per batch n)
        # b_ref:    (KH, Wp*Cin, Wo*Cout)  bf16  banded weight (resident)
        # y_ref:    (1, th, Wo*Cout)       bf16  conv output rows for this tile
        # stat_ref: (1, 1, 2, Wo*Cout)     f32   [sum ; sum-of-squares] over rows
        acc = jnp.zeros((th, y_ref.shape[-1]), jnp.float32)
        for i in range(kh):                       # static unroll over kernel rows
            if n_t == 1:                          # fully static slice
                start = i * dilation
            else:
                start = pl.program_id(1) * (th * stride) + i * dilation
            if stride == 1:
                rows = x_ref[0, pl.ds(start, th), :]
            else:
                rows = x_ref[0, pl.ds(start, th, stride), :]
            acc = acc + jnp.dot(rows, b_ref[i],
                                preferred_element_type=jnp.float32)
        y_ref[0] = acc.astype(y_ref.dtype)
        # partial BN statistics from the f32 accumulator (bf16 staging of y
        # does not affect the statistics)
        stat_ref[0, 0] = jnp.concatenate(
            [jnp.sum(acc, axis=0, keepdims=True),
             jnp.sum(acc * acc, axis=0, keepdims=True)], axis=0)
    return kernel


def _banded_weight(weight, wp, wo, stride, dilation, dtype):
    """B[i, w*Cin+ci, ow*Cout+co] = weight[co, ci, i, j] iff w == ow*stride + j*dil."""
    c_out, c_in, kh, kw = weight.shape
    w_f32 = weight.astype(jnp.float32)
    ow = jnp.arange(wo)
    mats = []
    for i in range(kh):
        b_i = jnp.zeros((wp * c_in, wo * c_out), jnp.float32)
        for j in range(kw):
            sel = jnp.zeros((wp, wo), jnp.float32)
            sel = sel.at[ow * stride + j * dilation, ow].set(1.0)
            b_i = b_i + jnp.kron(sel, w_f32[:, :, i, j].T)
        mats.append(b_i)
    return jnp.stack(mats, axis=0).astype(dtype)     # (KH, Wp*Cin, Wo*Cout)


# ----------------------------------------------------------------------------
# Wrapper
# ----------------------------------------------------------------------------
@functools.partial(
    jax.jit,
    static_argnames=("stride", "padding", "dilation", "tile_oh", "mxu_dtype"))
def conv_bn_hswish(x, weight, gamma, beta, *, stride=1, padding=0, dilation=1,
                   tile_oh=2048, mxu_dtype=jnp.bfloat16):
    """Forward pass of ConvBnHswish (groups=1, no conv bias).

    x:      (N, C_in, H, W) float32 NCHW;  weight: (C_out, C_in, KH, KW)
    gamma, beta: (C_out,) BatchNorm affine.  Training-mode batch statistics
    (biased variance), eps=1e-5.  MXU inputs are bf16, accumulation f32.
    """
    # TODO(synk): groups > 1 (grouped / depthwise conv) not implemented.
    # TODO(synk): optional fp8 staging of x / B on v7x (memory-bound win) is
    # left out pending an accuracy gate.
    c_out, c_in, kh, kw = weight.shape
    n, _, h, w = x.shape
    ho = (h + 2 * padding - dilation * (kh - 1) - 1) // stride + 1
    wo = (w + 2 * padding - dilation * (kw - 1) - 1) // stride + 1
    wp = w + 2 * padding
    wpc = wp * c_in
    wo_co = wo * c_out          # lane width of one output row (128 for 16x8)

    # --- output-row tiling: th output rows per grid step ---------------------
    cap = (4 << 20) // max(1, wo_co * 4) // 8 * 8          # ~4 MiB f32 accum
    th = max(8, min(_round_up(tile_oh, 8), cap))
    ho_pad8 = _round_up(ho, 8)
    th = min(th, ho_pad8)
    if n * (ho_pad8 // th) < 2 and ho_pad8 >= 16:          # keep 2 v7x TCs busy
        th = _round_up(ho_pad8 // 2, 8)
    ho_pad = _round_up(ho, th)
    n_t = ho_pad // th

    # --- layout prep: cast to bf16 FIRST, then pad + NHWC flatten ------------
    # Extra zero rows (hp_pad) make padded output rows exactly zero, so they
    # contribute nothing to the BN sums while keeping all in-kernel slices
    # in bounds.
    hp = h + 2 * padding
    hp_pad = max(hp, (ho_pad - 1) * stride + (kh - 1) * dilation + 1)
    xb = x.astype(mxu_dtype)
    xb = jnp.pad(xb, ((0, 0), (0, 0),
                      (padding, padding + (hp_pad - hp)),
                      (padding, padding)))
    x2 = jnp.transpose(xb, (0, 2, 3, 1)).reshape(n, hp_pad, wpc)

    bmat = _banded_weight(weight, wp, wo, stride, dilation, mxu_dtype)

    # --- VMEM budget (fits v7x's 64 MiB as well as v5e/v6e's 128 MiB) --------
    est = (2 * hp_pad * wpc * 2          # x slab (double buffered, bf16)
           + 2 * kh * wpc * wo_co * 2    # banded weight
           + 2 * th * wo_co * 2          # y tile out (bf16)
           + 2 * 2 * wo_co * 4           # stats tile out
           + 3 * th * wo_co * 4)         # f32 accumulator + temporaries
    if est > (24 << 20):
        # TODO(synk): tile the output-width axis (contiguous band slices of B)
        # for very wide images / large channel counts instead of failing.
        raise NotImplementedError("per-step working set too large for VMEM")
    vmem_limit = int(min(28 << 20, max(8 << 20, 2 * est)))

    kernel = _make_conv_stats_kernel(kh, stride, dilation, th, n_t)
    y, stats = pl.pallas_call(
        kernel,
        out_shape=(
            jax.ShapeDtypeStruct((n, ho_pad, wo_co), mxu_dtype),
            jax.ShapeDtypeStruct((n, n_t, 2, wo_co), jnp.float32),
        ),
        grid_spec=pltpu.PrefetchScalarGridSpec(
            num_scalar_prefetch=0,
            grid=(n, n_t),
            in_specs=[
                pl.BlockSpec((1, hp_pad, wpc), lambda b, t: (b, 0, 0)),
                pl.BlockSpec((kh, wpc, wo_co), lambda b, t: (0, 0, 0)),
            ],
            out_specs=(
                pl.BlockSpec((1, th, wo_co), lambda b, t: (b, t, 0)),
                pl.BlockSpec((1, 1, 2, wo_co), lambda b, t: (b, t, 0, 0)),
            ),
        ),
        compiler_params=pltpu.CompilerParams(
            dimension_semantics=("parallel", "parallel"),
            vmem_limit_bytes=vmem_limit),
    )(x2, bmat)

    # --- BN finalize (tiny) + affine + hswish + NCHW, fused by XLA -----------
    # TODO(synk): a Welford-style merge of per-tile (count, mean, M2) would be
    # more robust than E[y^2]-E[y]^2 when |mean| >> std.
    eps = 1e-5
    m_cnt = n * ho * wo
    ch = stats.sum(axis=(0, 1)).reshape(2, wo, c_out).sum(axis=1)   # (2, C_out)
    mean = ch[0] / m_cnt
    var = jnp.maximum(ch[1] / m_cnt - mean * mean, 0.0)
    scale = gamma.astype(jnp.float32) * jax.lax.rsqrt(var + eps)
    bias = beta.astype(jnp.float32) - mean * scale

    y_f32 = y[:, :ho, :].astype(jnp.float32).reshape(n, ho, wo, c_out)
    yh = y_f32 * scale.reshape(1, 1, 1, c_out) + bias.reshape(1, 1, 1, c_out)
    out = yh * jnp.clip(yh + 3.0, 0.0, 6.0) * (1.0 / 6.0)
    return jnp.transpose(out, (0, 3, 1, 2))      # NHWC -> NCHW (PyTorch layout)


# ----------------------------------------------------------------------------
# Pure-JAX reference (mirrors the PyTorch module, training-mode BN)
# ----------------------------------------------------------------------------
def _reference(x, weight, gamma, beta, *, stride, padding, dilation,
               conv_dtype=jnp.float32, stage_dtype=None):
    y = jax.lax.conv_general_dilated(
        x.astype(conv_dtype), weight.astype(conv_dtype),
        window_strides=(stride, stride),
        padding=[(padding, padding), (padding, padding)],
        rhs_dilation=(dilation, dilation),
        dimension_numbers=("NCHW", "OIHW", "NCHW"),
        preferred_element_type=jnp.float32)
    mean = jnp.mean(y, axis=(0, 2, 3), keepdims=True)
    var = jnp.mean((y - mean) ** 2, axis=(0, 2, 3), keepdims=True)
    if stage_dtype is not None:              # mirror the kernel's bf16 y staging
        y = y.astype(stage_dtype).astype(jnp.float32)
    yh = (y - mean) * jax.lax.rsqrt(var + 1e-5)
    yh = yh * gamma.reshape(1, -1, 1, 1) + beta.reshape(1, -1, 1, 1)
    return yh * jnp.clip(yh + 3.0, 0.0, 6.0) / 6.0


if __name__ == "__main__":
    key = jax.random.PRNGKey(0)
    kx, kw_ = jax.random.split(key)

    # ConvBnHswish(in_channel=4, out_channel=8, kernel_size=3, stride=1, padding=1)
    N, C_IN, H, W = 2, 4, 16, 16
    C_OUT, KS, STRIDE, PAD, DIL = 8, 3, 1, 1, 1

    x = jax.random.normal(kx, (N, C_IN, H, W), dtype=jnp.float32)
    weight = 0.1 * jax.random.normal(kw_, (C_OUT, C_IN, KS, KS), dtype=jnp.float32)
    gamma = 1.0 + 0.05 * jnp.arange(C_OUT, dtype=jnp.float32)   # BN weight
    beta = 0.02 * jnp.arange(C_OUT, dtype=jnp.float32) - 0.05   # BN bias

    out = conv_bn_hswish(x, weight, gamma, beta,
                         stride=STRIDE, padding=PAD, dilation=DIL)
    out = jax.block_until_ready(out)
    assert out.shape == (N, C_OUT, H, W)

    # tight check vs a reference with the same bf16 MXU inputs + bf16 y staging
    ref_bf16 = _reference(x, weight, gamma, beta, stride=STRIDE, padding=PAD,
                          dilation=DIL, conv_dtype=jnp.bfloat16,
                          stage_dtype=jnp.bfloat16)
    assert jnp.allclose(out, ref_bf16, atol=1.5e-2, rtol=1.5e-2), \
        float(jnp.max(jnp.abs(out - ref_bf16)))

    # sanity check vs the full-f32 reference (bf16 matmul inputs -> looser tol)
    ref_f32 = _reference(x, weight, gamma, beta, stride=STRIDE, padding=PAD,
                         dilation=DIL, conv_dtype=jnp.float32)
    assert jnp.allclose(out, ref_f32, atol=6e-2, rtol=6e-2), \
        float(jnp.max(jnp.abs(out - ref_f32)))

    print("KERNEL_OK")
</pallas_src>

<mosaic_0001>
module attributes {stable_mosaic.version = 11 : i64} {
  func.func @kernel(%arg0: i32, %arg1: i32, %arg2: memref<1x18x72xbf16, #tpu.memory_space<vmem>>, %arg3: memref<3x72x128xbf16, #tpu.memory_space<vmem>>, %arg4: memref<1x16x128xbf16, #tpu.memory_space<vmem>>, %arg5: memref<1x1x2x128xf32, #tpu.memory_space<vmem>>) attributes {dimension_semantics = [#tpu.dimension_semantics<parallel>, #tpu.dimension_semantics<parallel>], iteration_bounds = array<i64: 2, 1>, scalar_prefetch = 0 : i64, scratch_operands = 0 : i64, tpu.core_type = #tpu.core_type<tc>, window_params = [{transform_indices = @transform_0, window_bounds = array<i64: 1, 18, 72>}, {pipeline_mode = #tpu.pipeline_mode<synchronous>, transform_indices = @transform_1, window_bounds = array<i64: 3, 72, 128>}, {transform_indices = @transform_2, window_bounds = array<i64: 1, 16, 128>}, {transform_indices = @transform_3, window_bounds = array<i64: 1, 1, 2, 128>}]} {
    %cst = arith.constant 0.000000e+00 : f32
    %0 = vector.broadcast %cst : f32 to vector<16x128xf32>
    %c0 = arith.constant 0 : index
    %c0_0 = arith.constant 0 : index
    %c0_1 = arith.constant 0 : index
    %1 = vector.load %arg2[%c0, %c0_0, %c0_1] : memref<1x18x72xbf16, #tpu.memory_space<vmem>>, vector<1x16x72xbf16>
    %2 = vector.shape_cast %1 : vector<1x16x72xbf16> to vector<16x72xbf16>
    %c0_2 = arith.constant 0 : index
    %c0_3 = arith.constant 0 : index
    %c0_4 = arith.constant 0 : index
    %3 = vector.load %arg3[%c0_2, %c0_3, %c0_4] : memref<3x72x128xbf16, #tpu.memory_space<vmem>>, vector<1x72x128xbf16>
    %4 = vector.shape_cast %3 : vector<1x72x128xbf16> to vector<72x128xbf16>
    %cst_5 = arith.constant dense<0.000000e+00> : vector<16x128xf32>
    %5 = tpu.matmul %2, %4, %cst_5 {dimension_numbers = #tpu.dot_dimension_numbers<[1], [0], [0], [1], [0, 0, 1, 1], [], []>} : vector<16x72xbf16>, vector<72x128xbf16>, vector<16x128xf32> -> vector<16x128xf32>
    %6 = arith.addf %0, %5 : vector<16x128xf32>
    %c0_6 = arith.constant 0 : index
    %c1 = arith.constant 1 : index
    %c0_7 = arith.constant 0 : index
    %7 = vector.load %arg2[%c0_6, %c1, %c0_7] : memref<1x18x72xbf16, #tpu.memory_space<vmem>>, vector<1x16x72xbf16>
    %8 = vector.shape_cast %7 : vector<1x16x72xbf16> to vector<16x72xbf16>
    %c1_8 = arith.constant 1 : index
    %c0_9 = arith.constant 0 : index
    %c0_10 = arith.constant 0 : index
    %9 = vector.load %arg3[%c1_8, %c0_9, %c0_10] : memref<3x72x128xbf16, #tpu.memory_space<vmem>>, vector<1x72x128xbf16>
    %10 = vector.shape_cast %9 : vector<1x72x128xbf16> to vector<72x128xbf16>
    %cst_11 = arith.constant dense<0.000000e+00> : vector<16x128xf32>
    %11 = tpu.matmul %8, %10, %cst_11 {dimension_numbers = #tpu.dot_dimension_numbers<[1], [0], [0], [1], [0, 0, 1, 1], [], []>} : vector<16x72xbf16>, vector<72x128xbf16>, vector<16x128xf32> -> vector<16x128xf32>
    %12 = arith.addf %6, %11 : vector<16x128xf32>
    %c0_12 = arith.constant 0 : index
    %c2 = arith.constant 2 : index
    %c0_13 = arith.constant 0 : index
    %13 = vector.load %arg2[%c0_12, %c2, %c0_13] : memref<1x18x72xbf16, #tpu.memory_space<vmem>>, vector<1x16x72xbf16>
    %14 = vector.shape_cast %13 : vector<1x16x72xbf16> to vector<16x72xbf16>
    %c2_14 = arith.constant 2 : index
    %c0_15 = arith.constant 0 : index
    %c0_16 = arith.constant 0 : index
    %15 = vector.load %arg3[%c2_14, %c0_15, %c0_16] : memref<3x72x128xbf16, #tpu.memory_space<vmem>>, vector<1x72x128xbf16>
    %16 = vector.shape_cast %15 : vector<1x72x128xbf16> to vector<72x128xbf16>
    %cst_17 = arith.constant dense<0.000000e+00> : vector<16x128xf32>
    %17 = tpu.matmul %14, %16, %cst_17 {dimension_numbers = #tpu.dot_dimension_numbers<[1], [0], [0], [1], [0, 0, 1, 1], [], []>} : vector<16x72xbf16>, vector<72x128xbf16>, vector<16x128xf32> -> vector<16x128xf32>
    %18 = arith.addf %12, %17 : vector<16x128xf32>
    %19 = arith.truncf %18 : vector<16x128xf32> to vector<16x128xbf16>
    %c0_18 = arith.constant 0 : index
    %c0_19 = arith.constant 0 : index
    %c0_20 = arith.constant 0 : index
    %20 = vector.load %arg4[%c0_18, %c0_19, %c0_20] : memref<1x16x128xbf16, #tpu.memory_space<vmem>>, vector<1x16x128xbf16>
    %21 = vector.shape_cast %20 : vector<1x16x128xbf16> to vector<16x128xbf16>
    %22 = vector.shape_cast %19 : vector<16x128xbf16> to vector<1x16x128xbf16>
    tpu.vector_store %arg4[%c0_18, %c0_19, %c0_20], %22 {strides = array<i32>} : memref<1x16x128xbf16, #tpu.memory_space<vmem>>, vector<1x16x128xbf16>,
    %cst_21 = arith.constant dense<0.000000e+00> : vector<128xf32>
    %23 = vector.multi_reduction <add>, %18, %cst_21 [0] : vector<16x128xf32> to vector<128xf32>
    %24 = vector.shape_cast %23 : vector<128xf32> to vector<1x128xf32>
    %25 = arith.mulf %18, %18 : vector<16x128xf32>
    %cst_22 = arith.constant dense<0.000000e+00> : vector<128xf32>
    %26 = vector.multi_reduction <add>, %25, %cst_22 [0] : vector<16x128xf32> to vector<128xf32>
    %27 = vector.shape_cast %26 : vector<128xf32> to vector<1x128xf32>
    %28 = tpu.concatenate %24, %27 in 0 : vector<1x128xf32>, vector<1x128xf32> -> vector<2x128xf32>
    %c0_23 = arith.constant 0 : index
    %c0_24 = arith.constant 0 : index
    %c0_25 = arith.constant 0 : index
    %c0_26 = arith.constant 0 : index
    %29 = vector.load %arg5[%c0_23, %c0_24, %c0_25, %c0_26] : memref<1x1x2x128xf32, #tpu.memory_space<vmem>>, vector<1x1x2x128xf32>
    %30 = vector.shape_cast %29 : vector<1x1x2x128xf32> to vector<2x128xf32>
    %31 = vector.shape_cast %28 : vector<2x128xf32> to vector<1x1x2x128xf32>
    tpu.vector_store %arg5[%c0_23, %c0_24, %c0_25, %c0_26], %31 {strides = array<i32>} : memref<1x1x2x128xf32, #tpu.memory_space<vmem>>, vector<1x1x2x128xf32>,
    return
  }
  func.func @transform_0(%arg0: i32, %arg1: i32) -> (i32, i32, i32) {
    %c0_i32 = arith.constant 0 : i32
    %c0_i32_0 = arith.constant 0 : i32
    %c0_i32_1 = arith.constant 0 : i32
    return %arg0, %c0_i32, %c0_i32_0 : i32, i32, i32
  }
  func.func @transform_1(%arg0: i32, %arg1: i32) -> (i32, i32, i32) {
    %c0_i32 = arith.constant 0 : i32
    %c0_i32_0 = arith.constant 0 : i32
    %c0_i32_1 = arith.constant 0 : i32
    %c0_i32_2 = arith.constant 0 : i32
    return %c0_i32, %c0_i32_0, %c0_i32_1 : i32, i32, i32
  }
  func.func @transform_2(%arg0: i32, %arg1: i32) -> (i32, i32, i32) {
    %c0_i32 = arith.constant 0 : i32
    %c0_i32_0 = arith.constant 0 : i32
    return %arg0, %arg1, %c0_i32 : i32, i32, i32
  }
  func.func @transform_3(%arg0: i32, %arg1: i32) -> (i32, i32, i32, i32) {
    %c0_i32 = arith.constant 0 : i32
    %c0_i32_0 = arith.constant 0 : i32
    %c0_i32_1 = arith.constant 0 : i32
    return %arg0, %arg1, %c0_i32, %c0_i32_0 : i32, i32, i32, i32
  }
}

</mosaic_0001>

<llo_original>
// kernel: conv_bn_hswish.1
$region0: #{conv_bn_hswish.1}
  #allocation0 [shape = 'u32[]', space=smem, size = 0x4, offset = 0x4, fixed_abs, tag = 'smem constant byte address 0x4 - core index']
  #allocation1 [shape = 'u32[144,128]{1,0:T(1,128)}', space=vmem, size = 0x12000, scoped, tag = 'internal scratch']
  %s0 = inlined_call_operand.vmem [shape: bf16[2,18,72], index: 0, kind: input, shape index: {}]
  %s1 = inlined_call_operand.vmem [shape: bf16[3,72,128], index: 1, kind: input, shape index: {}]
  %s2 = inlined_call_operand.vmem [shape: bf16[2,16,128], index: 2, kind: output, shape index: {0}]
  %s3 = inlined_call_operand.vmem [shape: f32[2,1,2,128], index: 3, kind: output, shape index: {1}]
  %4 = xla_tuple %s2, %s3
  %s5 = sld [smem:[#allocation0]]
  $region49: #{conv_bn_hswish.1} parent=0
    _
  %s7 = ssub.s32 1, %s5
  %s8 = scalar_select 0, %s7, %s5
  loop: start=0, step=1, limit=4
  $region2: #{conv_bn_hswish.1} parent=0 // loop_pre_header
    _
  $region3: #{conv_bn_hswish.1} parent=0 // loop_header
    %s10 = sphi 0, %s14
    %p11 = scmp.ge.s32.totalorder %s10, 4
    %s17 = sphi 0, %s29
    %s18 = sphi 0, %s25
    %s19 = sphi 0, %s17
    %s20 = sphi 0, %s18
    %s21 = sphi 0, %s19
    %s22 = sphi 0, %s20
    %s32 = sphi 0, %s34
    %s35 = sphi 0, %s32
    %s36 = sphi 0, %s35
    %s52 = sphi 0, %s36
    %s56 = sphi 0, %s56
    %s58 = sphi 0, %s56
    %s59 = sphi 0, %s58
    %s73 = sphi 0, %s59
    %s81 = sphi 0, %s83
    %s84 = sphi 0, %s81
    %s85 = sphi 0, %s84
    %s101 = sphi 0, %s85
    %s109 = sphi 0, %s111
    %s112 = sphi 0, %s109
    %s113 = sphi 0, %s112
    %s129 = sphi 0, %s113
  $region4: #{conv_bn_hswish.1} parent=0 // loop_header_branch
    %13 = sbr.rel (%p11) target = $region8
  $region5: #{conv_bn_hswish.1} parent=0 // loop_body
    %s15 = ssub.s32 %s10, 1
    %s16 = ssub.s32 %s10, 2
    %s23 = sadd.s32 1, %s18
    %p24 = scmp.ge.s32.totalorder %s23, 1
    %s25 = scalar_select %p24, 0, %s23
    %s26 = sadd.s32 1, %s17
    %s27 = scalar_select %p24, %s26, %s17
    %p28 = scmp.ge.s32.totalorder %s27, 2
    %s29 = scalar_select %p28, 0, %s27
    %s30 = ssub.s32 %s17, %s29
    %p31 = scmp.eq.s32.totalorder %s30, 0
    %s33 = sadd.s32 %s32, 1
    %s34 = scalar_select %p31, %s32, %s33
    %p37 = pneg %p31
    %p38 = scmp.eq.s32.totalorder %s10, 1
    %p39 = por %p37, %p38
    %p40 = scmp.ne.s32.totalorder %s32, %s35
    %p41 = scmp.eq.s32.totalorder %s10, 0
    %p42 = por %p40, %p41
    %p43 = scmp.ne.s32.totalorder %s32, %s35
    %p44 = scmp.eq.s32.totalorder %s15, 1
    %p45 = por %p43, %p44
    %p46 = scmp.ne.s32.totalorder %s35, %s36
    %p47 = scmp.eq.s32.totalorder %s15, 0
    %p48 = por %p46, %p47
    %p49 = scmp.ne.s32.totalorder %s35, %s36
    %p50 = scmp.eq.s32.totalorder %s16, 1
    %p51 = por %p49, %p50
    %p53 = scmp.ne.s32.totalorder %s36, %s52
    %p54 = scmp.eq.s32.totalorder %s16, 0
    %p55 = por %p53, %p54
    %s57 = sadd.s32 %s56, 1
    %p60 = scmp.eq.s32.totalorder %s10, 1
    %p61 = scmp.ne.s32.totalorder %s56, %s58
    %p62 = scmp.eq.s32.totalorder %s10, 0
    %p63 = por %p61, %p62
    %p64 = scmp.ne.s32.totalorder %s56, %s58
    %p65 = scmp.eq.s32.totalorder %s15, 1
    %p66 = por %p64, %p65
    %p67 = scmp.ne.s32.totalorder %s58, %s59
    %p68 = scmp.eq.s32.totalorder %s15, 0
    %p69 = por %p67, %p68
    %p70 = scmp.ne.s32.totalorder %s58, %s59
    %p71 = scmp.eq.s32.totalorder %s16, 1
    %p72 = por %p70, %p71
    %p74 = scmp.ne.s32.totalorder %s59, %s73
    %p75 = scmp.eq.s32.totalorder %s16, 0
    %p76 = por %p74, %p75
    %s77 = ssub.s32 %s17, %s29
    %s78 = ssub.s32 %s18, %s25
    %s79 = sor.u32 %s77, %s78
    %p80 = scmp.eq.s32.totalorder %s79, 0
    %s82 = sadd.s32 %s81, 1
    %s83 = scalar_select %p80, %s81, %s82
    %p86 = pneg %p80
    %p87 = scmp.eq.s32.totalorder %s10, 1
    %p88 = por %p86, %p87
    %p89 = scmp.ne.s32.totalorder %s81, %s84
    %p90 = scmp.eq.s32.totalorder %s10, 0
    %p91 = por %p89, %p90
    %p92 = scmp.ne.s32.totalorder %s81, %s84
    %p93 = scmp.eq.s32.totalorder %s15, 1
    %p94 = por %p92, %p93
    %p95 = scmp.ne.s32.totalorder %s84, %s85
    %p96 = scmp.eq.s32.totalorder %s15, 0
    %p97 = por %p95, %p96
    %p98 = scmp.ne.s32.totalorder %s84, %s85
    %p99 = scmp.eq.s32.totalorder %s16, 1
    %p100 = por %p98, %p99
    %p102 = scmp.ne.s32.totalorder %s85, %s101
    %p103 = scmp.eq.s32.totalorder %s16, 0
    %p104 = por %p102, %p103
    %s105 = ssub.s32 %s17, %s29
    %s106 = ssub.s32 %s18, %s25
    %s107 = sor.u32 %s105, %s106
    %p108 = scmp.eq.s32.totalorder %s107, 0
    %s110 = sadd.s32 %s109, 1
    %s111 = scalar_select %p108, %s109, %s110
    %p114 = pneg %p108
    %p115 = scmp.eq.s32.totalorder %s10, 1
    %p116 = por %p114, %p115
    %p117 = scmp.ne.s32.totalorder %s109, %s112
    %p118 = scmp.eq.s32.totalorder %s10, 0
    %p119 = por %p117, %p118
    %p120 = scmp.ne.s32.totalorder %s109, %s112
    %p121 = scmp.eq.s32.totalorder %s15, 1
    %p122 = por %p120, %p121
    %p123 = scmp.ne.s32.totalorder %s112, %s113
    %p124 = scmp.eq.s32.totalorder %s15, 0
    %p125 = por %p123, %p124
    %p126 = scmp.ne.s32.totalorder %s112, %s113
    %p127 = scmp.eq.s32.totalorder %s16, 1
    %p128 = por %p126, %p127
    %p130 = scmp.ne.s32.totalorder %s113, %s129
    %p131 = scmp.eq.s32.totalorder %s16, 0
    %p132 = por %p130, %p131
    %p133 = scmp.le.s32.totalorder 1, %s10
    %p134 = scmp.lt.s32.totalorder %s10, 3
    %p135 = pnand %p133, %p134
    %p136 = pneg %p135
    // Predicated region
    $region9: #{conv_bn_hswish.1} parent=5 // pred_check
      _
    $region10: #{conv_bn_hswish.1} parent=5 // pred_check_branch
      %138 = sbr.rel (%p135) target = $region12
    $region11: #{conv_bn_hswish.1} parent=5 // pred_region
      %s139 = ssub.s32 %s10, 1
      // Predicated region
      $region13: #{conv_bn_hswish.1} parent=11 // pred_check
        %p140 = pneg %p69
      $region14: #{conv_bn_hswish.1} parent=11 // pred_check_branch
        %142 = sbr.rel (%p140) target = $region16
      $region15: #{conv_bn_hswish.1} parent=11 // pred_region
        _
      $region16: #{conv_bn_hswish.1} parent=11 // pred_fallthru
        _
    $region12: #{conv_bn_hswish.1} parent=5 // pred_fallthru
      _
    %p143 = scmp.lt.s32.totalorder %s10, 2
    // Predicated region
    $region17: #{conv_bn_hswish.1} parent=5 // pred_check
      %p144 = pneg %p143
    $region18: #{conv_bn_hswish.1} parent=5 // pred_check_branch
      %146 = sbr.rel (%p144) target = $region20
    $region19: #{conv_bn_hswish.1} parent=5 // pred_region
      // Predicated region
      $region21: #{conv_bn_hswish.1} parent=19 // pred_check
        %p147 = pneg %p42
      $region22: #{conv_bn_hswish.1} parent=19 // pred_check_branch
        %149 = sbr.rel (%p147) target = $region24
      $region23: #{conv_bn_hswish.1} parent=19 // pred_region
        %p150 = scmp.lt.s32.totalorder %s17, 1
        %s151 = scalar_select %p150, %s17, 1
        %s152 = smul.addr %s151, 3
        %s153 = smul.addr %s152, 4
        %s154 = scalar_lea.vmem %s0, %s153
      $region24: #{conv_bn_hswish.1} parent=19 // pred_fallthru
        _
    $region20: #{conv_bn_hswish.1} parent=5 // pred_fallthru
      _
    %p155 = scmp.le.s32.totalorder 1, %s10
    %p156 = scmp.lt.s32.totalorder %s10, 3
    %p157 = pnand %p155, %p156
    %p158 = pneg %p157
    // Predicated region
    $region25: #{conv_bn_hswish.1} parent=5 // pred_check
      _
    $region26: #{conv_bn_hswish.1} parent=5 // pred_check_branch
      %160 = sbr.rel (%p157) target = $region28
    $region27: #{conv_bn_hswish.1} parent=5 // pred_region
      %s161 = ssub.s32 %s10, 1
      %p162 = scmp.lt.s32.totalorder %s19, 1
      %s163 = scalar_select %p162, %s19, 1
      %s164 = smul.addr %s163, 3
      %s165 = smul.addr %s164, 4
      %s166 = scalar_lea.vmem %s0, %s165
      %p167 = pneg %p48
      %p168 = pneg %p45
      %p169 = pneg %p69
      %p170 = pneg %p66
      %p171 = pneg %p97
      %p172 = pneg %p94
      %s173 = smul.u32 2, %s20
      %p174 = scmp.lt.s32.totalorder %s19, 1
      %s175 = scalar_select %p174, %s19, 1
      %p176 = scmp.lt.s32.totalorder %s173, 1
      %s177 = scalar_select %p176, %s173, 1
      %s178 = smul.addr %s175, 2
      %s179 = sadd.s32 %s177, %s178
      %s180 = smul.addr %s179, 4
      %s181 = scalar_lea.vmem %s2, %s180
      %p182 = pneg %p125
      %p183 = pneg %p122
      %p184 = scmp.lt.s32.totalorder %s19, 1
      %s185 = scalar_select %p184, %s19, 1
      %p186 = scmp.lt.s32.totalorder %s20, 0
      %s187 = scalar_select %p186, %s20, 0
      %s188 = sadd.s32 %s187, %s185
      %s189 = smul.addr %s188, 2
      %s190 = scalar_lea.vmem %s3, %s189
      %p191 = scmp.lt.s32.totalorder %s19, 1
      %s192 = scalar_select %p191, %s19, 1
      %s193 = smul.addr %s192, 3
      %s194 = smul.addr %s193, 4
      %s195 = scalar_lea.vmem %s0, %s194
      %s196 = smul.u32 2, %s20
      %p197 = scmp.lt.s32.totalorder %s19, 1
      %s198 = scalar_select %p197, %s19, 1
      %p199 = scmp.lt.s32.totalorder %s196, 1
      %s200 = scalar_select %p199, %s196, 1
      %s201 = smul.addr %s198, 2
      %s202 = sadd.s32 %s200, %s201
      %s203 = smul.addr %s202, 4
      %s204 = scalar_lea.vmem %s2, %s203
      %s205 = smul.u32 2, %s20
      %p206 = scmp.lt.s32.totalorder %s19, 1
      %s207 = scalar_select %p206, %s19, 1
      %p208 = scmp.lt.s32.totalorder %s20, 0
      %s209 = scalar_select %p208, %s20, 0
      %s210 = sadd.s32 %s209, %s207
      %s211 = smul.addr %s210, 2
      %s212 = scalar_lea.vmem %s3, %s211
      %v214 = vld [vmem:[%s195] sm:$0xf]
      %v215 = vld [vmem:[%s195 + $0x4] sm:$0xf]
      %v216 = vld [vmem:[%s1] sm:$0xf]
      %v217 = vld [vmem:[%s1 + $0x4] sm:$0xf]
      %v218 = vld [vmem:[%s1 + $0x8] sm:$0xf]
      %v219 = vld [vmem:[%s1 + $0xc] sm:$0xf]
      %v220 = vld [vmem:[%s1 + $0x10] sm:$0xf]
      %v221 = vld [vmem:[%s1 + $0x14] sm:$0xf]
      %v222 = vld [vmem:[%s1 + $0x18] sm:$0xf]
      %v223 = vld [vmem:[%s1 + $0x1c] sm:$0xf]
      %v224 = vld [vmem:[%s1 + $0x20] sm:$0xf]
      %v225 = vld [vmem:[%s195 + $0x8] sm:$0x1]
      %s226 = scalar_lea.vmem %s1, 36
      %v227 = vld [vmem:[%s226] sm:$0xf]
      %v228 = vld [vmem:[%s226 + $0x4] sm:$0xf]
      %v229 = vld [vmem:[%s226 + $0x8] sm:$0xf]
      %v230 = vld [vmem:[%s226 + $0xc] sm:$0xf]
      %v231 = vld [vmem:[%s226 + $0x10] sm:$0xf]
      %v232 = vld [vmem:[%s226 + $0x14] sm:$0xf]
      %v233 = vld [vmem:[%s226 + $0x18] sm:$0xf]
      %v234 = vld [vmem:[%s226 + $0x1c] sm:$0xf]
      %v235 = vld [vmem:[%s226 + $0x20] sm:$0xf]
      %v239 = vunpack.c.l.b16 %v214
      %v240 = vunpack.c.l.b16 %v215
      %v241 = vunpack.c.l.b16 %v225
      %v242 = vpack.c.b16 %v240, %v239
      %v243 = vpack.c.b16 %v241, %v241
      %vm244 = vsmask.f32 7424
      %v246 = vshrl.u32 %v242, 16
      %v248 = vshll.u32 %v242, 16
      %v250 = vrot.slane %v248, 1
      %v251 = vor.u32 %v246, %v250
      %v253 = vshll.u32 %v243, 16
      %v255 = vrot.slane %v253, 1
      %v256 = vsel %vm244, %v251, %v255
      %v266 = vunpack.c.l.b16 %v227
      %v267 = vunpack.c.l.b16 %v228
      %v268 = vunpack.c.l.b16 %v229
      %v269 = vunpack.c.l.b16 %v230
      %v270 = vunpack.c.l.b16 %v231
      %v271 = vunpack.c.l.b16 %v232
      %v272 = vunpack.c.l.b16 %v233
      %v273 = vunpack.c.l.b16 %v234
      %v274 = vunpack.c.l.b16 %v235
      %v275 = vpack.c.b16 %v267, %v266
      %v276 = vpack.c.b16 %v269, %v268
      %v277 = vpack.c.b16 %v271, %v270
      %v278 = vpack.c.b16 %v273, %v272
      %v279 = vpack.c.b16 %v274, %v274
      %vm284 = vcmask 588800
      %v286 = vsel %vm284, %v256, 0
      %vm288 = vcmask 1043456
      %v290 = vsel %vm288, %v279, 0
      %292 = vmatprep.subr.bf16.mxu0 0
      %293 = vmatpush1.bf16.msra.mxu0 0
      %294 = vmatprep.subr.bf16.mxu0 0
      %295 = vmatpush1.bf16.msra.mxu0 0
      %296 = vmatprep.subr.bf16.mxu0 0
      %297 = vmatpush1.bf16.msra.mxu0 0
      %298 = vmatprep.subr.bf16.mxu0 0
      %299 = vmatpush1.bf16.msra.mxu0 %v290
      %300 = vmatprep.subr.bf16.mxu0 0
      %301 = vmatpush1.bf16.msra.mxu0 %v278
      %302 = vmatprep.subr.bf16.mxu0 0
      %303 = vmatpush1.bf16.msra.mxu0 %v277
      %304 = vmatprep.subr.bf16.mxu0 0
      %305 = vmatpush1.bf16.msra.mxu0 %v276
      %306 = vmatprep.subr.bf16.mxu0 0
      %307 = vmatpush1.bf16.msra.mxu0 %v275
      %308 = vmatprep.subr.bf16.mxu0 0
      %309 = vmatpush2.bf16.msra.mxu0 0
      %310 = vmatprep.subr.bf16.mxu0 0
      %311 = vmatpush2.bf16.msra.mxu0 0
      %312 = vmatprep.subr.bf16.mxu0 0
      %313 = vmatpush2.bf16.msra.mxu0 0
      %314 = vmatprep.subr.bf16.mxu0 0
      %315 = vmatpush2.bf16.msra.mxu0 0
      %316 = vmatprep.subr.bf16.mxu0 0
      %317 = vmatpush2.bf16.msra.mxu0 0
      %318 = vmatprep.subr.bf16.mxu0 0
      %319 = vmatpush2.bf16.msra.mxu0 0
      %320 = vmatprep.subr.bf16.mxu0 0
      %321 = vmatpush2.bf16.msra.mxu0 0
      %322 = vmatprep.subr.bf16.mxu0 0
      %323 = vmatpush2.bf16.msra.mxu0 0
      %324 = vmatprep.mubr.bf16.mxu0 0
      %325 = vmatmul.mubr.bf16.gmra.mxu0 %v286
      %v326 = vpop.f32.mrf.mxu0
      %v327 = vadd.f32 0.0, %v326
      %v328 = vpop.f32.mrf.mxu0
      %v329 = vpop.f32.mrf.mxu0
      %v330 = vadd.f32 0.0, %v329
      %v331 = vpop.f32.mrf.mxu0
      %332 = vdwg.mxu0
      %v342 = vunpack.c.l.b16 %v216
      %v343 = vunpack.c.l.b16 %v217
      %v344 = vunpack.c.l.b16 %v218
      %v345 = vunpack.c.l.b16 %v219
      %v346 = vunpack.c.l.b16 %v220
      %v347 = vunpack.c.l.b16 %v221
      %v348 = vunpack.c.l.b16 %v222
      %v349 = vunpack.c.l.b16 %v223
      %v350 = vunpack.c.l.b16 %v224
      %v351 = vpack.c.b16 %v343, %v342
      %v352 = vpack.c.b16 %v345, %v344
      %v353 = vpack.c.b16 %v347, %v346
      %v354 = vpack.c.b16 %v349, %v348
      %v355 = vpack.c.b16 %v350, %v350
      %v360 = vsel %vm284, %v242, 0
      %v363 = vsel %vm288, %v355, 0
      %365 = vmatprep.subr.bf16.mxu0 0
      %366 = vmatpush1.bf16.msra.mxu0 0
      %367 = vmatprep.subr.bf16.mxu0 0
      %368 = vmatpush1.bf16.msra.mxu0 0
      %369 = vmatprep.subr.bf16.mxu0 0
      %370 = vmatpush1.bf16.msra.mxu0 0
      %371 = vmatprep.subr.bf16.mxu0 0
      %372 = vmatpush1.bf16.msra.mxu0 %v363
      %373 = vmatprep.subr.bf16.mxu0 0
      %374 = vmatpush1.bf16.msra.mxu0 %v354
      %375 = vmatprep.subr.bf16.mxu0 0
      %376 = vmatpush1.bf16.msra.mxu0 %v353
      %377 = vmatprep.subr.bf16.mxu0 0
      %378 = vmatpush1.bf16.msra.mxu0 %v352
      %379 = vmatprep.subr.bf16.mxu0 0
      %380 = vmatpush1.bf16.msra.mxu0 %v351
      %381 = vmatprep.subr.bf16.mxu0 0
      %382 = vmatpush2.bf16.msra.mxu0 0
      %383 = vmatprep.subr.bf16.mxu0 0
      %384 = vmatpush2.bf16.msra.mxu0 0
      %385 = vmatprep.subr.bf16.mxu0 0
      %386 = vmatpush2.bf16.msra.mxu0 0
      %387 = vmatprep.subr.bf16.mxu0 0
      %388 = vmatpush2.bf16.msra.mxu0 0
      %389 = vmatprep.subr.bf16.mxu0 0
      %390 = vmatpush2.bf16.msra.mxu0 0
      %391 = vmatprep.subr.bf16.mxu0 0
      %392 = vmatpush2.bf16.msra.mxu0 0
      %393 = vmatprep.subr.bf16.mxu0 0
      %394 = vmatpush2.bf16.msra.mxu0 0
      %395 = vmatprep.subr.bf16.mxu0 0
      %396 = vmatpush2.bf16.msra.mxu0 0
      %397 = vmatprep.mubr.bf16.mxu0 0
      %398 = vmatmul.mubr.bf16.gmra.mxu0 %v360
      %v399 = vpop.f32.mrf.mxu0
      %v400 = vadd.f32 %v327, %v399
      %v401 = vpop.f32.mrf.mxu0
      %v402 = vpop.f32.mrf.mxu0
      %v403 = vadd.f32 %v330, %v402
      %v404 = vpop.f32.mrf.mxu0
      %405 = vdwg.mxu0
      %v406 = vld [vmem:[%s195] sm:$0xe]
      %s407 = scalar_lea.vmem %s1, 72
      %v408 = vld [vmem:[%s407] sm:$0xf]
      %v409 = vld [vmem:[%s407 + $0x4] sm:$0xf]
      %v410 = vld [vmem:[%s407 + $0x8] sm:$0xf]
      %v411 = vld [vmem:[%s407 + $0xc] sm:$0xf]
      %v412 = vld [vmem:[%s407 + $0x10] sm:$0xf]
      %v413 = vld [vmem:[%s407 + $0x14] sm:$0xf]
      %v414 = vld [vmem:[%s407 + $0x18] sm:$0xf]
      %v415 = vld [vmem:[%s407 + $0x1c] sm:$0xf]
      %v416 = vld [vmem:[%s407 + $0x20] sm:$0xf]
      %v418 = vunpack.c.l.b16 %v406
      %v419 = vpack.c.b16 %v240, %v418
      %vm420 = vcmask 1046528
      %v421 = vrot.slane %v419, 1
      %v422 = vrot.slane %v243, 1
      %v423 = vsel %vm420, %v421, %v422
      %v433 = vunpack.c.l.b16 %v408
      %v434 = vunpack.c.l.b16 %v409
      %v435 = vunpack.c.l.b16 %v410
      %v436 = vunpack.c.l.b16 %v411
      %v437 = vunpack.c.l.b16 %v412
      %v438 = vunpack.c.l.b16 %v413
      %v439 = vunpack.c.l.b16 %v414
      %v440 = vunpack.c.l.b16 %v415
      %v441 = vunpack.c.l.b16 %v416
      %v442 = vpack.c.b16 %v434, %v433
      %v443 = vpack.c.b16 %v436, %v435
      %v444 = vpack.c.b16 %v438, %v437
      %v445 = vpack.c.b16 %v440, %v439
      %v446 = vpack.c.b16 %v441, %v441
      %v452 = vsel %vm284, %v423, 0
      %v455 = vsel %vm288, %v446, 0
      %457 = vmatprep.subr.bf16.mxu0 0
      %458 = vmatpush1.bf16.msra.mxu0 0
      %459 = vmatprep.subr.bf16.mxu0 0
      %460 = vmatpush1.bf16.msra.mxu0 0
      %461 = vmatprep.subr.bf16.mxu0 0
      %462 = vmatpush1.bf16.msra.mxu0 0
      %463 = vmatprep.subr.bf16.mxu0 0
      %464 = vmatpush1.bf16.msra.mxu0 %v455
      %465 = vmatprep.subr.bf16.mxu0 0
      %466 = vmatpush1.bf16.msra.mxu0 %v445
      %467 = vmatprep.subr.bf16.mxu0 0
      %468 = vmatpush1.bf16.msra.mxu0 %v444
      %469 = vmatprep.subr.bf16.mxu0 0
      %470 = vmatpush1.bf16.msra.mxu0 %v443
      %471 = vmatprep.subr.bf16.mxu0 0
      %472 = vmatpush1.bf16.msra.mxu0 %v442
      %473 = vmatprep.subr.bf16.mxu0 0
      %474 = vmatpush2.bf16.msra.mxu0 0
      %475 = vmatprep.subr.bf16.mxu0 0
      %476 = vmatpush2.bf16.msra.mxu0 0
      %477 = vmatprep.subr.bf16.mxu0 0
      %478 = vmatpush2.bf16.msra.mxu0 0
      %479 = vmatprep.subr.bf16.mxu0 0
      %480 = vmatpush2.bf16.msra.mxu0 0
      %481 = vmatprep.subr.bf16.mxu0 0
      %482 = vmatpush2.bf16.msra.mxu0 0
      %483 = vmatprep.subr.bf16.mxu0 0
      %484 = vmatpush2.bf16.msra.mxu0 0
      %485 = vmatprep.subr.bf16.mxu0 0
      %486 = vmatpush2.bf16.msra.mxu0 0
      %487 = vmatprep.subr.bf16.mxu0 0
      %488 = vmatpush2.bf16.msra.mxu0 0
      %489 = vmatprep.mubr.bf16.mxu0 0
      %490 = vmatmul.mubr.bf16.gmra.mxu0 %v452
      %v491 = vpop.f32.mrf.mxu0
      %v492 = vadd.f32 0.0, %v491
      %v493 = vpop.f32.mrf.mxu0
      %v494 = vpop.f32.mrf.mxu0
      %v495 = vadd.f32 0.0, %v494
      %v496 = vpop.f32.mrf.mxu0
      %497 = vdwg.mxu0
      %v498 = vadd.f32 %v400, %v492
      %v499 = vadd.f32 %v403, %v495
      %v500 = vpack.c.bf16 %v499, %v498
      %v502 = vunpack.c.l.b16 %v500
      %v503 = vunpack.c.h.b16 %v500
      %v504 = vpack.c.b16 %v502, %v502
      %v505 = vpack.c.b16 %v503, %v503
      %508 = vst [vmem:[%s204] sm:$0xf] %v504
      %509 = vst [vmem:[%s204 + $0x4] sm:$0xf] %v505
      %v510 = vadd.f32 %v498, %v499
      %v511 = vrot.slane %v510, 4
      %v512 = vadd.f32 %v510, %v511
      %v513 = vrot.slane %v512, 2
      %v514 = vadd.f32 %v512, %v513
      %v515 = vrot.slane %v514, 1
      %v516 = vadd.f32 %v514, %v515
      %v517 = vmul.f32 %v498, %v498
      %v518 = vmul.f32 %v499, %v499
      %v519 = vadd.f32 %v517, %v518
      %v520 = vrot.slane %v519, 4
      %v521 = vadd.f32 %v519, %v520
      %v522 = vrot.slane %v521, 2
      %v523 = vadd.f32 %v521, %v522
      %v524 = vrot.slane %v523, 1
      %v525 = vadd.f32 %v523, %v524
      %vm526 = vcmask 1040384
      %v527 = vsel %vm526, %v516, %v525
      %528 = vst [vmem:[%s212] sm:$0x3] %v527
      %s529 = smul.u32 2, %s20
      %p530 = scmp.lt.s32.totalorder %s19, 1
      %s531 = scalar_select %p530, %s19, 1
      %p532 = scmp.lt.s32.totalorder %s529, 1
      %s533 = scalar_select %p532, %s529, 1
      %s534 = smul.addr %s531, 2
      %s535 = sadd.s32 %s533, %s534
      %s536 = smul.addr %s535, 4
      %s537 = scalar_lea.vmem %s2, %s536
      %p538 = scmp.lt.s32.totalorder %s19, 1
      %s539 = scalar_select %p538, %s19, 1
      %p540 = scmp.lt.s32.totalorder %s20, 0
      %s541 = scalar_select %p540, %s20, 0
      %s542 = sadd.s32 %s541, %s539
      %s543 = smul.addr %s542, 2
      %s544 = scalar_lea.vmem %s3, %s543
      // Predicated region
      $region29: #{conv_bn_hswish.1} parent=27 // pred_check
        %p545 = pneg %p94
      $region30: #{conv_bn_hswish.1} parent=27 // pred_check_branch
        %547 = sbr.rel (%p545) target = $region32
      $region31: #{conv_bn_hswish.1} parent=27 // pred_region
        %s548 = smul.u32 2, %s20
      $region32: #{conv_bn_hswish.1} parent=27 // pred_fallthru
        _
      // Predicated region
      $region33: #{conv_bn_hswish.1} parent=27 // pred_check
        %p549 = pneg %p122
      $region34: #{conv_bn_hswish.1} parent=27 // pred_check_branch
        %551 = sbr.rel (%p549) target = $region36
      $region35: #{conv_bn_hswish.1} parent=27 // pred_region
        _
      $region36: #{conv_bn_hswish.1} parent=27 // pred_fallthru
        _
    $region28: #{conv_bn_hswish.1} parent=5 // pred_fallthru
      _
    %p552 = scmp.le.s32.totalorder 2, %s10
    // Predicated region
    $region37: #{conv_bn_hswish.1} parent=5 // pred_check
      %p553 = pneg %p552
    $region38: #{conv_bn_hswish.1} parent=5 // pred_check_branch
      %555 = sbr.rel (%p553) target = $region40
    $region39: #{conv_bn_hswish.1} parent=5 // pred_region
      %s556 = ssub.s32 %s10, 2
      // Predicated region
      $region41: #{conv_bn_hswish.1} parent=39 // pred_check
        %p557 = pneg %p100
      $region42: #{conv_bn_hswish.1} parent=39 // pred_check_branch
        %559 = sbr.rel (%p557) target = $region44
      $region43: #{conv_bn_hswish.1} parent=39 // pred_region
        %s560 = smul.u32 2, %s22
        %p561 = scmp.lt.s32.totalorder %s21, 1
        %s562 = scalar_select %p561, %s21, 1
        %p563 = scmp.lt.s32.totalorder %s560, 1
        %s564 = scalar_select %p563, %s560, 1
        %s565 = smul.addr %s562, 2
        %s566 = sadd.s32 %s564, %s565
        %s567 = smul.addr %s566, 4
        %s568 = scalar_lea.vmem %s2, %s567
      $region44: #{conv_bn_hswish.1} parent=39 // pred_fallthru
        _
      // Predicated region
      $region45: #{conv_bn_hswish.1} parent=39 // pred_check
        %p569 = pneg %p128
      $region46: #{conv_bn_hswish.1} parent=39 // pred_check_branch
        %571 = sbr.rel (%p569) target = $region48
      $region47: #{conv_bn_hswish.1} parent=39 // pred_region
        %p572 = scmp.lt.s32.totalorder %s21, 1
        %s573 = scalar_select %p572, %s21, 1
        %p574 = scmp.lt.s32.totalorder %s22, 0
        %s575 = scalar_select %p574, %s22, 0
        %s576 = sadd.s32 %s575, %s573
        %s577 = smul.addr %s576, 2
        %s578 = scalar_lea.vmem %s3, %s577
      $region48: #{conv_bn_hswish.1} parent=39 // pred_fallthru
        _
    $region40: #{conv_bn_hswish.1} parent=5 // pred_fallthru
      _
  $region6: #{conv_bn_hswish.1} parent=0 // loop_footer
    %s14 = sadd.s32 1, %s10
  $region7: #{conv_bn_hswish.1} parent=0 // loop_footer_branch
    %9 = sbr.rel target = $region3
  $region8: #{conv_bn_hswish.1} parent=0 // loop_exit
    _

</llo_original>
